<compile_context>
chip_gen: v5e
topology: v5e:2x2
jax: 0.10.0
libtpu: 0.0.40
codegen_flags: <defaults>
</compile_context>

<pallas_src>
import functools

import jax
import jax.numpy as jnp
from jax.experimental import pallas as pl
from jax.experimental.pallas import tpu as pltpu


def _contour_kernel(fea_ref, lnw_ref, lnb_ref, wqt_ref, wkv_ref, wp_ref,
                    bp_ref, out_ref, *, num_heads, head_dim, eps):
    f32 = jnp.float32
    fea = fea_ref[...].astype(f32)              # (TB, N, C) whole token rows
    TB, N, C = fea.shape

    lnw = lnw_ref[...].astype(f32)              # (1, C)
    lnb = lnb_ref[...].astype(f32)              # (1, C)

    # LayerNorm over all N rows (row 0 is negligible waste; keeps the lane
    # reduction aligned and avoids slicing before it).
    mu = jnp.mean(fea, axis=-1, keepdims=True)
    var = jnp.mean((fea - mu) ** 2, axis=-1, keepdims=True)
    xn = (fea - mu) * jax.lax.rsqrt(var + eps) * lnw + lnb      # (TB, N, C)

    x_last = xn[:, N - 1, :]                    # (TB, C)      post-LN contour token
    x_mid = xn[:, 1:N - 1, :]                   # (TB, nf, C)  post-LN feature tokens
    f_mid = fea[:, 1:N - 1, :]                  # (TB, nf, C)  pre-LN residual

    # Fused contour-token K/V projection (attention scale pre-folded into Wk).
    wkv = wkv_ref[...]                          # (C, 2C) = [Wk*scale | Wv]
    kv = jnp.dot(x_last.astype(wkv.dtype), wkv, preferred_element_type=f32)
    k = kv[:, :C]                               # (TB, C) already scaled
    v = kv[:, C:]                               # (TB, C)

    wqt = wqt_ref[...]                          # (C, C) == Wq^T
    wp = wp_ref[...]                            # (C, C)

    # Accumulate: bias + residual first, then per-head sigmoid-gated vp rows.
    acc = f_mid + bp_ref[...].astype(f32)       # bp (1, C) broadcasts over (TB, nf, C)
    for h in range(num_heads):
        hs = slice(h * head_dim, (h + 1) * head_dim)
        # Tiny (TB, hd) @ (hd, C) MXU ops that fold Wq / Wp away from the M rows.
        w_eff = jnp.dot(k[:, hs].astype(wqt.dtype), wqt[hs, :],
                        preferred_element_type=f32)             # (TB, C)
        vp = jnp.dot(v[:, hs].astype(wp.dtype), wp[hs, :],
                     preferred_element_type=f32)                # (TB, C)
        # Per-row logits: VPU mul + lane reduction, no materialized broadcasts.
        logit = jnp.sum(x_mid * w_eff[:, None, :], axis=-1, keepdims=True)  # (TB, nf, 1)
        acc = acc + jax.nn.sigmoid(logit) * vp[:, None, :]      # attn_drop(p=0) == id

    out_ref[...] = acc.astype(out_ref.dtype)


def _pick_tb(B, N, C, itemsize, target_rows=512, max_tile_bytes=8 << 20):
    """Batch-tile TB (divisor of B): big enough to approach the HBM roofline,
    small enough to fit the VMEM budget, preferring >= 2 grid steps (v7x has
    2 TensorCores) when that does not shrink the tile below the row target."""
    divisors = [d for d in range(1, B + 1) if B % d == 0]
    fitting = [d for d in divisors if d * N * C * itemsize <= max_tile_bytes] or divisors[:1]
    tb = max(fitting)
    for d in fitting:                       # smallest TB reaching the row target
        if d * N >= target_rows:
            tb = d
            break
    if B // tb < 2:                         # leave work for the second TC (v7x)
        alts = [d for d in fitting
                if B // d >= 2 and (d * N >= target_rows or tb * N < target_rows)]
        if alts:
            tb = max(alts)
    return tb


def contour_token_inference(fea, ln_w, ln_b, wq, wk, wv, wp, bp,
                            num_heads=1, eps=1e-5):
    B, N, C = fea.shape
    nf = N - 2
    head_dim = C // num_heads
    scale = head_dim ** (-0.5)
    f32 = jnp.float32

    # One-time weight plumbing (outside the per-token hot path); weights keep
    # their native dtype so bf16 weights feed the MXU directly.
    wk_scaled = (wk.astype(f32) * scale).astype(wk.dtype)
    wkv = jnp.concatenate([wk_scaled, wv], axis=1)              # (C, 2C)
    wq_t = wq.T                                                 # (C, C)

    itemsize = jnp.dtype(fea.dtype).itemsize
    w_itemsize = jnp.dtype(wq.dtype).itemsize
    TB = _pick_tb(B, N, C, itemsize)
    grid = (B // TB,)

    # VMEM estimate (no double counting): double-buffered fea/out tiles,
    # (conservatively) double-buffered weights, ~5 live f32 (TB, N, C) values.
    tile_io = 2 * (TB * N * C + TB * nf * C) * itemsize
    weight_bytes = 2 * (4 * C * C + 3 * C) * w_itemsize
    scratch = 5 * TB * N * C * 4
    vmem_limit = int(min(max(tile_io + weight_bytes + scratch + (4 << 20),
                             16 << 20), 40 << 20))              # 40 MiB cap fits v7x

    kernel = functools.partial(_contour_kernel, num_heads=num_heads,
                               head_dim=head_dim, eps=eps)

    # TODO(synk): for deployment shapes with C not a multiple of 128, the final
    # store is a masked vst; repack the store path lane-dense if that dominates.
    return pl.pallas_call(
        kernel,
        out_shape=jax.ShapeDtypeStruct((B, nf, C), fea.dtype),
        grid=grid,
        in_specs=[
            # Trailing block dims equal full array dims -> (8,128) rule is met.
            pl.BlockSpec((TB, N, C), lambda b: (b, 0, 0)),      # fea (no wrapper slice)
            pl.BlockSpec((1, C), lambda b: (0, 0)),             # LN weight
            pl.BlockSpec((1, C), lambda b: (0, 0)),             # LN bias
            pl.BlockSpec((C, C), lambda b: (0, 0)),             # Wq^T
            pl.BlockSpec((C, 2 * C), lambda b: (0, 0)),         # [Wk*scale | Wv]
            pl.BlockSpec((C, C), lambda b: (0, 0)),             # Wproj
            pl.BlockSpec((1, C), lambda b: (0, 0)),             # proj bias
        ],
        out_specs=pl.BlockSpec((TB, nf, C), lambda b: (b, 0, 0)),
        compiler_params=pltpu.CompilerParams(
            dimension_semantics=("parallel",),
            vmem_limit_bytes=vmem_limit),
    )(fea, ln_w.reshape(1, C), ln_b.reshape(1, C), wq_t, wkv, wp,
      bp.reshape(1, C))


def _reference(fea, ln_w, ln_b, wq, wk, wv, wp, bp, num_heads=1, eps=1e-5):
    """Pure-JAX mirror of the PyTorch forward (for validation)."""
    B, N, C = fea.shape
    head_dim = C // num_heads
    scale = head_dim ** (-0.5)
    mean = fea.mean(-1, keepdims=True)
    var = ((fea - mean) ** 2).mean(-1, keepdims=True)
    x = (fea - mean) / jnp.sqrt(var + eps) * ln_w + ln_b
    T_s = x[:, -1:, :]
    F_s = x[:, 1:-1, :]
    q = (F_s @ wq).reshape(B, N - 2, num_heads, head_dim).transpose(0, 2, 1, 3)
    k = (T_s @ wk).reshape(B, 1, num_heads, head_dim).transpose(0, 2, 1, 3)
    v = (T_s @ wv).reshape(B, 1, num_heads, head_dim).transpose(0, 2, 1, 3)
    attn = jax.nn.sigmoid((q @ jnp.swapaxes(k, -2, -1)) * scale)
    infer = (attn @ v).transpose(0, 2, 1, 3).reshape(B, N - 2, C)
    infer = infer @ wp + bp
    return infer + fea[:, 1:-1, :]


if __name__ == "__main__":
    B, N, C = 2, 10, 32      # tokens: [cls-ish, N-2 feature tokens, contour token]
    num_heads = 1            # module default; `num` arg of torch forward is unused

    key = jax.random.PRNGKey(0)
    k_fea, k_q, k_k, k_v, k_p, k_pb = jax.random.split(key, 6)

    fea = jax.random.normal(k_fea, (B, N, C), dtype=jnp.float32)

    # PyTorch LayerNorm defaults: weight=1, bias=0
    ln_w = jnp.ones((C,), jnp.float32)
    ln_b = jnp.zeros((C,), jnp.float32)
    wq = 0.05 * jax.random.normal(k_q, (C, C), dtype=jnp.float32)
    wk = 0.05 * jax.random.normal(k_k, (C, C), dtype=jnp.float32)
    wv = 0.05 * jax.random.normal(k_v, (C, C), dtype=jnp.float32)
    wp = 0.05 * jax.random.normal(k_p, (C, C), dtype=jnp.float32)
    bp = 0.01 * jax.random.normal(k_pb, (C,), dtype=jnp.float32)

    out = contour_token_inference(fea, ln_w, ln_b, wq, wk, wv, wp, bp,
                                  num_heads=num_heads)
    out = jax.block_until_ready(out)

    ref = _reference(fea, ln_w, ln_b, wq, wk, wv, wp, bp, num_heads=num_heads)
    assert out.shape == (B, N - 2, C)
    assert jnp.allclose(out, ref, atol=1e-4, rtol=1e-4), "mismatch vs JAX reference"

    print("KERNEL_OK")
</pallas_src>

<mosaic_0001>
module attributes {stable_mosaic.version = 11 : i64} {
  func.func @_contour_kernel(%arg0: i32, %arg1: memref<1x10x32xf32, #tpu.memory_space<vmem>>, %arg2: memref<1x32xf32, #tpu.memory_space<vmem>>, %arg3: memref<1x32xf32, #tpu.memory_space<vmem>>, %arg4: memref<32x32xf32, #tpu.memory_space<vmem>>, %arg5: memref<32x64xf32, #tpu.memory_space<vmem>>, %arg6: memref<32x32xf32, #tpu.memory_space<vmem>>, %arg7: memref<1x32xf32, #tpu.memory_space<vmem>>, %arg8: memref<1x8x32xf32, #tpu.memory_space<vmem>>) attributes {dimension_semantics = [#tpu.dimension_semantics<parallel>], iteration_bounds = array<i64: 2>, scalar_prefetch = 0 : i64, scratch_operands = 0 : i64, tpu.core_type = #tpu.core_type<tc>, window_params = [{transform_indices = @transform_0, window_bounds = array<i64: 1, 10, 32>}, {pipeline_mode = #tpu.pipeline_mode<synchronous>, transform_indices = @transform_1, window_bounds = array<i64: 1, 32>}, {pipeline_mode = #tpu.pipeline_mode<synchronous>, transform_indices = @transform_2, window_bounds = array<i64: 1, 32>}, {pipeline_mode = #tpu.pipeline_mode<synchronous>, transform_indices = @transform_3, window_bounds = array<i64: 32, 32>}, {pipeline_mode = #tpu.pipeline_mode<synchronous>, transform_indices = @transform_4, window_bounds = array<i64: 32, 64>}, {pipeline_mode = #tpu.pipeline_mode<synchronous>, transform_indices = @transform_5, window_bounds = array<i64: 32, 32>}, {pipeline_mode = #tpu.pipeline_mode<synchronous>, transform_indices = @transform_6, window_bounds = array<i64: 1, 32>}, {transform_indices = @transform_7, window_bounds = array<i64: 1, 8, 32>}]} {
    %c0 = arith.constant 0 : index
    %c0_0 = arith.constant 0 : index
    %c0_1 = arith.constant 0 : index
    %0 = vector.load %arg1[%c0, %c0_0, %c0_1] : memref<1x10x32xf32, #tpu.memory_space<vmem>>, vector<1x10x32xf32>
    %c0_2 = arith.constant 0 : index
    %c0_3 = arith.constant 0 : index
    %1 = vector.load %arg2[%c0_2, %c0_3] : memref<1x32xf32, #tpu.memory_space<vmem>>, vector<1x32xf32>
    %c0_4 = arith.constant 0 : index
    %c0_5 = arith.constant 0 : index
    %2 = vector.load %arg3[%c0_4, %c0_5] : memref<1x32xf32, #tpu.memory_space<vmem>>, vector<1x32xf32>
    %cst = arith.constant dense<0.000000e+00> : vector<1x10xf32>
    %3 = vector.multi_reduction <add>, %0, %cst [2] : vector<1x10x32xf32> to vector<1x10xf32>
    %4 = vector.shape_cast %3 : vector<1x10xf32> to vector<1x10x1xf32>
    %cst_6 = arith.constant 3.200000e+01 : f32
    %5 = vector.broadcast %cst_6 : f32 to vector<1x10x1xf32>
    %6 = arith.divf %4, %5 : vector<1x10x1xf32>
    %7 = vector.broadcast %6 : vector<1x10x1xf32> to vector<1x10x32xf32>
    %8 = arith.subf %0, %7 : vector<1x10x32xf32>
    %9 = arith.mulf %8, %8 : vector<1x10x32xf32>
    %cst_7 = arith.constant dense<0.000000e+00> : vector<1x10xf32>
    %10 = vector.multi_reduction <add>, %9, %cst_7 [2] : vector<1x10x32xf32> to vector<1x10xf32>
    %11 = vector.shape_cast %10 : vector<1x10xf32> to vector<1x10x1xf32>
    %cst_8 = arith.constant 3.200000e+01 : f32
    %12 = vector.broadcast %cst_8 : f32 to vector<1x10x1xf32>
    %13 = arith.divf %11, %12 : vector<1x10x1xf32>
    %14 = vector.broadcast %6 : vector<1x10x1xf32> to vector<1x10x32xf32>
    %15 = arith.subf %0, %14 : vector<1x10x32xf32>
    %cst_9 = arith.constant 9.99999974E-6 : f32
    %16 = vector.broadcast %cst_9 : f32 to vector<1x10x1xf32>
    %17 = arith.addf %13, %16 : vector<1x10x1xf32>
    %18 = math.rsqrt %17 : vector<1x10x1xf32>
    %19 = vector.broadcast %18 : vector<1x10x1xf32> to vector<1x10x32xf32>
    %20 = arith.mulf %15, %19 : vector<1x10x32xf32>
    %21 = vector.shape_cast %1 : vector<1x32xf32> to vector<1x1x32xf32>
    %22 = vector.broadcast %21 : vector<1x1x32xf32> to vector<1x10x32xf32>
    %23 = arith.mulf %20, %22 : vector<1x10x32xf32>
    %24 = vector.shape_cast %2 : vector<1x32xf32> to vector<1x1x32xf32>
    %25 = vector.broadcast %24 : vector<1x1x32xf32> to vector<1x10x32xf32>
    %26 = arith.addf %23, %25 : vector<1x10x32xf32>
    %27 = vector.extract_strided_slice %26 {offsets = [0, 9, 0], sizes = [1, 1, 32], strides = [1, 1, 1]} : vector<1x10x32xf32> to vector<1x1x32xf32>
    %28 = vector.shape_cast %27 : vector<1x1x32xf32> to vector<1x32xf32>
    %29 = vector.extract_strided_slice %26 {offsets = [0, 1, 0], sizes = [1, 8, 32], strides = [1, 1, 1]} : vector<1x10x32xf32> to vector<1x8x32xf32>
    %30 = vector.extract_strided_slice %0 {offsets = [0, 1, 0], sizes = [1, 8, 32], strides = [1, 1, 1]} : vector<1x10x32xf32> to vector<1x8x32xf32>
    %c0_10 = arith.constant 0 : index
    %c0_11 = arith.constant 0 : index
    %31 = vector.load %arg5[%c0_10, %c0_11] : memref<32x64xf32, #tpu.memory_space<vmem>>, vector<32x64xf32>
    %cst_12 = arith.constant dense<0.000000e+00> : vector<1x64xf32>
    %32 = tpu.matmul %28, %31, %cst_12 {dimension_numbers = #tpu.dot_dimension_numbers<[1], [0], [0], [1], [0, 0, 1, 1], [], []>} : vector<1x32xf32>, vector<32x64xf32>, vector<1x64xf32> -> vector<1x64xf32>
    %33 = vector.extract_strided_slice %32 {offsets = [0, 0], sizes = [1, 32], strides = [1, 1]} : vector<1x64xf32> to vector<1x32xf32>
    %34 = vector.extract_strided_slice %32 {offsets = [0, 32], sizes = [1, 32], strides = [1, 1]} : vector<1x64xf32> to vector<1x32xf32>
    %c0_13 = arith.constant 0 : index
    %c0_14 = arith.constant 0 : index
    %35 = vector.load %arg4[%c0_13, %c0_14] : memref<32x32xf32, #tpu.memory_space<vmem>>, vector<32x32xf32>
    %c0_15 = arith.constant 0 : index
    %c0_16 = arith.constant 0 : index
    %36 = vector.load %arg6[%c0_15, %c0_16] : memref<32x32xf32, #tpu.memory_space<vmem>>, vector<32x32xf32>
    %c0_17 = arith.constant 0 : index
    %c0_18 = arith.constant 0 : index
    %37 = vector.load %arg7[%c0_17, %c0_18] : memref<1x32xf32, #tpu.memory_space<vmem>>, vector<1x32xf32>
    %38 = vector.shape_cast %37 : vector<1x32xf32> to vector<1x1x32xf32>
    %39 = vector.broadcast %38 : vector<1x1x32xf32> to vector<1x8x32xf32>
    %40 = arith.addf %30, %39 : vector<1x8x32xf32>
    %cst_19 = arith.constant dense<0.000000e+00> : vector<1x32xf32>
    %41 = tpu.matmul %33, %35, %cst_19 {dimension_numbers = #tpu.dot_dimension_numbers<[1], [0], [0], [1], [0, 0, 1, 1], [], []>} : vector<1x32xf32>, vector<32x32xf32>, vector<1x32xf32> -> vector<1x32xf32>
    %cst_20 = arith.constant dense<0.000000e+00> : vector<1x32xf32>
    %42 = tpu.matmul %34, %36, %cst_20 {dimension_numbers = #tpu.dot_dimension_numbers<[1], [0], [0], [1], [0, 0, 1, 1], [], []>} : vector<1x32xf32>, vector<32x32xf32>, vector<1x32xf32> -> vector<1x32xf32>
    %43 = vector.shape_cast %41 : vector<1x32xf32> to vector<1x1x32xf32>
    %44 = vector.broadcast %43 : vector<1x1x32xf32> to vector<1x8x32xf32>
    %45 = arith.mulf %29, %44 : vector<1x8x32xf32>
    %cst_21 = arith.constant dense<0.000000e+00> : vector<1x8xf32>
    %46 = vector.multi_reduction <add>, %45, %cst_21 [2] : vector<1x8x32xf32> to vector<1x8xf32>
    %47 = vector.shape_cast %46 : vector<1x8xf32> to vector<1x8x1xf32>
    %48 = arith.negf %47 : vector<1x8x1xf32>
    %49 = math.exp %48 : vector<1x8x1xf32>
    %cst_22 = arith.constant 1.000000e+00 : f32
    %50 = vector.broadcast %cst_22 : f32 to vector<1x8x1xf32>
    %51 = arith.addf %50, %49 : vector<1x8x1xf32>
    %52 = arith.divf %50, %51 : vector<1x8x1xf32>
    %53 = vector.shape_cast %42 : vector<1x32xf32> to vector<1x1x32xf32>
    %54 = vector.broadcast %52 : vector<1x8x1xf32> to vector<1x8x32xf32>
    %55 = vector.broadcast %53 : vector<1x1x32xf32> to vector<1x8x32xf32>
    %56 = arith.mulf %54, %55 : vector<1x8x32xf32>
    %57 = arith.addf %40, %56 : vector<1x8x32xf32>
    %c0_23 = arith.constant 0 : index
    %c0_24 = arith.constant 0 : index
    %c0_25 = arith.constant 0 : index
    %58 = vector.load %arg8[%c0_23, %c0_24, %c0_25] : memref<1x8x32xf32, #tpu.memory_space<vmem>>, vector<1x8x32xf32>
    tpu.vector_store %arg8[%c0_23, %c0_24, %c0_25], %57 {strides = array<i32>} : memref<1x8x32xf32, #tpu.memory_space<vmem>>, vector<1x8x32xf32>,
    return
  }
  func.func @transform_0(%arg0: i32) -> (i32, i32, i32) {
    %c0_i32 = arith.constant 0 : i32
    %c0_i32_0 = arith.constant 0 : i32
    %c0_i32_1 = arith.constant 0 : i32
    return %arg0, %c0_i32, %c0_i32_0 : i32, i32, i32
  }
  func.func @transform_1(%arg0: i32) -> (i32, i32) {
    %c0_i32 = arith.constant 0 : i32
    %c0_i32_0 = arith.constant 0 : i32
    %c0_i32_1 = arith.constant 0 : i32
    return %c0_i32, %c0_i32_0 : i32, i32
  }
  func.func @transform_2(%arg0: i32) -> (i32, i32) {
    %c0_i32 = arith.constant 0 : i32
    %c0_i32_0 = arith.constant 0 : i32
    %c0_i32_1 = arith.constant 0 : i32
    return %c0_i32, %c0_i32_0 : i32, i32
  }
  func.func @transform_3(%arg0: i32) -> (i32, i32) {
    %c0_i32 = arith.constant 0 : i32
    %c0_i32_0 = arith.constant 0 : i32
    %c0_i32_1 = arith.constant 0 : i32
    return %c0_i32, %c0_i32_0 : i32, i32
  }
  func.func @transform_4(%arg0: i32) -> (i32, i32) {
    %c0_i32 = arith.constant 0 : i32
    %c0_i32_0 = arith.constant 0 : i32
    %c0_i32_1 = arith.constant 0 : i32
    return %c0_i32, %c0_i32_0 : i32, i32
  }
  func.func @transform_5(%arg0: i32) -> (i32, i32) {
    %c0_i32 = arith.constant 0 : i32
    %c0_i32_0 = arith.constant 0 : i32
    %c0_i32_1 = arith.constant 0 : i32
    return %c0_i32, %c0_i32_0 : i32, i32
  }
  func.func @transform_6(%arg0: i32) -> (i32, i32) {
    %c0_i32 = arith.constant 0 : i32
    %c0_i32_0 = arith.constant 0 : i32
    %c0_i32_1 = arith.constant 0 : i32
    return %c0_i32, %c0_i32_0 : i32, i32
  }
  func.func @transform_7(%arg0: i32) -> (i32, i32, i32) {
    %c0_i32 = arith.constant 0 : i32
    %c0_i32_0 = arith.constant 0 : i32
    %c0_i32_1 = arith.constant 0 : i32
    return %arg0, %c0_i32, %c0_i32_0 : i32, i32, i32
  }
}

</mosaic_0001>

<llo_original>
// kernel: tpu_custom_call.1
$region0: #{tpu_custom_call.1}
  #allocation0 [shape = 'u32[]', space=smem, size = 0x4, offset = 0x4, fixed_abs, tag = 'smem constant byte address 0x4 - core index']
  #allocation1 [shape = 'u32[72,128]{1,0:T(1,128)}', space=vmem, size = 0x9000, scoped, tag = 'internal scratch']
  %s0 = inlined_call_operand.vmem [shape: f32[2,10,32], index: 0, kind: input, shape index: {}]
  %s1 = inlined_call_operand.vmem [shape: f32[1,32], index: 1, kind: input, shape index: {}]
  %s2 = inlined_call_operand.vmem [shape: f32[1,32], index: 2, kind: input, shape index: {}]
  %s3 = inlined_call_operand.vmem [shape: f32[32,32], index: 3, kind: input, shape index: {}]
  %s4 = inlined_call_operand.hbm [shape: f32[32,64], index: 4, kind: input, shape index: {}]
  %s5 = inlined_call_operand.hbm [shape: f32[32,32], index: 5, kind: input, shape index: {}]
  %s6 = inlined_call_operand.vmem [shape: f32[1,32], index: 6, kind: input, shape index: {}]
  %s7 = inlined_call_operand.hbm [shape: f32[2,8,32], index: 7, kind: output, shape index: {}]
  %s8 = sld [smem:[#allocation0]]
  $region69: #{tpu_custom_call.1} parent=0
    _
  %s10 = ssub.s32 1, %s8
  %s11 = scalar_select 0, %s10, %s8
  $region1: #{tpu_custom_call.1} parent=0
    #allocation2 [shape = 'u8[16384]{0}', space=vmem, size = 0x4000, scoped, tag = 'input window, operand 4, single buffered']
    #allocation3 [shape = 's32[2]{0}', space=sflag, size = 0x8, scoped, tag = 'scoped memory for tpu_custom_call.1']
    #allocation4 [shape = 's32[2]{0}', space=sflag, size = 0x8, scoped, tag = 'scoped memory for tpu_custom_call.1']
    #allocation5 [shape = 'u8[16384]{0}', space=vmem, size = 0x4000, scoped, tag = 'input window, operand 5, single buffered']
    #allocation6 [shape = 's32[1]{0}', space=sflag, size = 0x4, scoped, tag = 'scoped memory for tpu_custom_call.1']
    #allocation7 [shape = 'u8[8192]{0}', space=vmem, size = 0x2000, scoped, tag = 'output window, operand 0']
    %12 = vsyncpa [#allocation3], 0
    %13 = vsyncpa [#allocation6], 0
    %14 = vsyncpa [#allocation4], 0
    %s15 = scalar_lea.sflag [#allocation4], 1
    %16 = vsyncpa %s15, 0
    loop: start=0, step=1, limit=4
    $region2: #{tpu_custom_call.1} parent=1 // loop_pre_header
      _
    $region3: #{tpu_custom_call.1} parent=1 // loop_header
      %s18 = sphi 0, %s22
      %p19 = scmp.ge.s32.totalorder %s18, 4
      %s28 = sphi 0, %s30
      %s31 = sphi 0, %s28
      %s32 = sphi 0, %s31
      %s48 = sphi 0, %s32
      %s52 = sphi 0, %s52
      %s54 = sphi 0, %s52
      %s55 = sphi 0, %s54
      %s69 = sphi 0, %s55
      %s73 = sphi 0, %s73
      %s75 = sphi 0, %s73
      %s76 = sphi 0, %s75
      %s90 = sphi 0, %s76
      %s94 = sphi 0, %s94
      %s96 = sphi 0, %s94
      %s97 = sphi 0, %s96
      %s111 = sphi 0, %s97
      %s115 = sphi 0, %s115
      %s117 = sphi 0, %s115
      %s118 = sphi 0, %s117
      %s132 = sphi 0, %s118
      %s136 = sphi 0, %s136
      %s138 = sphi 0, %s136
      %s139 = sphi 0, %s138
      %s153 = sphi 0, %s139
      %s157 = sphi 0, %s157
      %s159 = sphi 0, %s157
      %s160 = sphi 0, %s159
      %s174 = sphi 0, %s160
      %s180 = sphi 0, %s182
      %s183 = sphi 0, %s180
      %s184 = sphi 0, %s183
      %s200 = sphi 0, %s184
    $region4: #{tpu_custom_call.1} parent=1 // loop_header_branch
      %21 = sbr.rel (%p19) target = $region8
    $region5: #{tpu_custom_call.1} parent=1 // loop_body
      %s23 = ssub.s32 %s18, 1
      %s24 = ssub.s32 %s18, 2
      %s25 = sadd.s32 %s18, 1
      %s26 = ssub.s32 %s18, %s25
      %p27 = scmp.eq.s32.totalorder %s26, 0
      %s29 = sadd.s32 %s28, 1
      %s30 = scalar_select %p27, %s28, %s29
      %p33 = pneg %p27
      %p34 = scmp.eq.s32.totalorder %s18, 1
      %p35 = por %p33, %p34
      %p36 = scmp.ne.s32.totalorder %s28, %s31
      %p37 = scmp.eq.s32.totalorder %s18, 0
      %p38 = por %p36, %p37
      %p39 = scmp.ne.s32.totalorder %s28, %s31
      %p40 = scmp.eq.s32.totalorder %s23, 1
      %p41 = por %p39, %p40
      %p42 = scmp.ne.s32.totalorder %s31, %s32
      %p43 = scmp.eq.s32.totalorder %s23, 0
      %p44 = por %p42, %p43
      %p45 = scmp.ne.s32.totalorder %s31, %s32
      %p46 = scmp.eq.s32.totalorder %s24, 1
      %p47 = por %p45, %p46
      %p49 = scmp.ne.s32.totalorder %s32, %s48
      %p50 = scmp.eq.s32.totalorder %s24, 0
      %p51 = por %p49, %p50
      %s53 = sadd.s32 %s52, 1
      %p56 = scmp.eq.s32.totalorder %s18, 1
      %p57 = scmp.ne.s32.totalorder %s52, %s54
      %p58 = scmp.eq.s32.totalorder %s18, 0
      %p59 = por %p57, %p58
      %p60 = scmp.ne.s32.totalorder %s52, %s54
      %p61 = scmp.eq.s32.totalorder %s23, 1
      %p62 = por %p60, %p61
      %p63 = scmp.ne.s32.totalorder %s54, %s55
      %p64 = scmp.eq.s32.totalorder %s23, 0
      %p65 = por %p63, %p64
      %p66 = scmp.ne.s32.totalorder %s54, %s55
      %p67 = scmp.eq.s32.totalorder %s24, 1
      %p68 = por %p66, %p67
      %p70 = scmp.ne.s32.totalorder %s55, %s69
      %p71 = scmp.eq.s32.totalorder %s24, 0
      %p72 = por %p70, %p71
      %s74 = sadd.s32 %s73, 1
      %p77 = scmp.eq.s32.totalorder %s18, 1
      %p78 = scmp.ne.s32.totalorder %s73, %s75
      %p79 = scmp.eq.s32.totalorder %s18, 0
      %p80 = por %p78, %p79
      %p81 = scmp.ne.s32.totalorder %s73, %s75
      %p82 = scmp.eq.s32.totalorder %s23, 1
      %p83 = por %p81, %p82
      %p84 = scmp.ne.s32.totalorder %s75, %s76
      %p85 = scmp.eq.s32.totalorder %s23, 0
      %p86 = por %p84, %p85
      %p87 = scmp.ne.s32.totalorder %s75, %s76
      %p88 = scmp.eq.s32.totalorder %s24, 1
      %p89 = por %p87, %p88
      %p91 = scmp.ne.s32.totalorder %s76, %s90
      %p92 = scmp.eq.s32.totalorder %s24, 0
      %p93 = por %p91, %p92
      %s95 = sadd.s32 %s94, 1
      %p98 = scmp.eq.s32.totalorder %s18, 1
      %p99 = scmp.ne.s32.totalorder %s94, %s96
      %p100 = scmp.eq.s32.totalorder %s18, 0
      %p101 = por %p99, %p100
      %p102 = scmp.ne.s32.totalorder %s94, %s96
      %p103 = scmp.eq.s32.totalorder %s23, 1
      %p104 = por %p102, %p103
      %p105 = scmp.ne.s32.totalorder %s96, %s97
      %p106 = scmp.eq.s32.totalorder %s23, 0
      %p107 = por %p105, %p106
      %p108 = scmp.ne.s32.totalorder %s96, %s97
      %p109 = scmp.eq.s32.totalorder %s24, 1
      %p110 = por %p108, %p109
      %p112 = scmp.ne.s32.totalorder %s97, %s111
      %p113 = scmp.eq.s32.totalorder %s24, 0
      %p114 = por %p112, %p113
      %s116 = sadd.s32 %s115, 1
      %p119 = scmp.eq.s32.totalorder %s18, 1
      %p120 = scmp.ne.s32.totalorder %s115, %s117
      %p121 = scmp.eq.s32.totalorder %s18, 0
      %p122 = por %p120, %p121
      %p123 = scmp.ne.s32.totalorder %s115, %s117
      %p124 = scmp.eq.s32.totalorder %s23, 1
      %p125 = por %p123, %p124
      %p126 = scmp.ne.s32.totalorder %s117, %s118
      %p127 = scmp.eq.s32.totalorder %s23, 0
      %p128 = por %p126, %p127
      %p129 = scmp.ne.s32.totalorder %s117, %s118
      %p130 = scmp.eq.s32.totalorder %s24, 1
      %p131 = por %p129, %p130
      %p133 = scmp.ne.s32.totalorder %s118, %s132
      %p134 = scmp.eq.s32.totalorder %s24, 0
      %p135 = por %p133, %p134
      %s137 = sadd.s32 %s136, 1
      %p140 = scmp.eq.s32.totalorder %s18, 1
      %p141 = scmp.ne.s32.totalorder %s136, %s138
      %p142 = scmp.eq.s32.totalorder %s18, 0
      %p143 = por %p141, %p142
      %p144 = scmp.ne.s32.totalorder %s136, %s138
      %p145 = scmp.eq.s32.totalorder %s23, 1
      %p146 = por %p144, %p145
      %p147 = scmp.ne.s32.totalorder %s138, %s139
      %p148 = scmp.eq.s32.totalorder %s23, 0
      %p149 = por %p147, %p148
      %p150 = scmp.ne.s32.totalorder %s138, %s139
      %p151 = scmp.eq.s32.totalorder %s24, 1
      %p152 = por %p150, %p151
      %p154 = scmp.ne.s32.totalorder %s139, %s153
      %p155 = scmp.eq.s32.totalorder %s24, 0
      %p156 = por %p154, %p155
      %s158 = sadd.s32 %s157, 1
      %p161 = scmp.eq.s32.totalorder %s18, 1
      %p162 = scmp.ne.s32.totalorder %s157, %s159
      %p163 = scmp.eq.s32.totalorder %s18, 0
      %p164 = por %p162, %p163
      %p165 = scmp.ne.s32.totalorder %s157, %s159
      %p166 = scmp.eq.s32.totalorder %s23, 1
      %p167 = por %p165, %p166
      %p168 = scmp.ne.s32.totalorder %s159, %s160
      %p169 = scmp.eq.s32.totalorder %s23, 0
      %p170 = por %p168, %p169
      %p171 = scmp.ne.s32.totalorder %s159, %s160
      %p172 = scmp.eq.s32.totalorder %s24, 1
      %p173 = por %p171, %p172
      %p175 = scmp.ne.s32.totalorder %s160, %s174
      %p176 = scmp.eq.s32.totalorder %s24, 0
      %p177 = por %p175, %p176
      %s178 = ssub.s32 %s18, %s25
      %p179 = scmp.eq.s32.totalorder %s178, 0
      %s181 = sadd.s32 %s180, 1
      %s182 = scalar_select %p179, %s180, %s181
      %p185 = pneg %p179
      %p186 = scmp.eq.s32.totalorder %s18, 1
      %p187 = por %p185, %p186
      %p188 = scmp.ne.s32.totalorder %s180, %s183
      %p189 = scmp.eq.s32.totalorder %s18, 0
      %p190 = por %p188, %p189
      %p191 = scmp.ne.s32.totalorder %s180, %s183
      %p192 = scmp.eq.s32.totalorder %s23, 1
      %p193 = por %p191, %p192
      %p194 = scmp.ne.s32.totalorder %s183, %s184
      %p195 = scmp.eq.s32.totalorder %s23, 0
      %p196 = por %p194, %p195
      %p197 = scmp.ne.s32.totalorder %s183, %s184
      %p198 = scmp.eq.s32.totalorder %s24, 1
      %p199 = por %p197, %p198
      %p201 = scmp.ne.s32.totalorder %s184, %s200
      %p202 = scmp.eq.s32.totalorder %s24, 0
      %p203 = por %p201, %p202
      %p204 = scmp.le.s32.totalorder 1, %s18
      %p205 = scmp.lt.s32.totalorder %s18, 3
      %p206 = pnand %p204, %p205
      %p207 = pneg %p206
      // Predicated region
      $region9: #{tpu_custom_call.1} parent=5 // pred_check
        _
      $region10: #{tpu_custom_call.1} parent=5 // pred_check_branch
        %209 = sbr.rel (%p206) target = $region12
      $region11: #{tpu_custom_call.1} parent=5 // pred_region
        %s210 = ssub.s32 %s18, 1
        // Predicated region
        $region13: #{tpu_custom_call.1} parent=11 // pred_check
          %p211 = pneg %p65
        $region14: #{tpu_custom_call.1} parent=11 // pred_check_branch
          %213 = sbr.rel (%p211) target = $region16
        $region15: #{tpu_custom_call.1} parent=11 // pred_region
          _
        $region16: #{tpu_custom_call.1} parent=11 // pred_fallthru
          _
        // Predicated region
        $region17: #{tpu_custom_call.1} parent=11 // pred_check
          %p214 = pneg %p86
        $region18: #{tpu_custom_call.1} parent=11 // pred_check_branch
          %216 = sbr.rel (%p214) target = $region20
        $region19: #{tpu_custom_call.1} parent=11 // pred_region
          _
        $region20: #{tpu_custom_call.1} parent=11 // pred_fallthru
          _
        // Predicated region
        $region21: #{tpu_custom_call.1} parent=11 // pred_check
          %p217 = pneg %p107
        $region22: #{tpu_custom_call.1} parent=11 // pred_check_branch
          %219 = sbr.rel (%p217) target = $region24
        $region23: #{tpu_custom_call.1} parent=11 // pred_region
          _
        $region24: #{tpu_custom_call.1} parent=11 // pred_fallthru
          _
        // Predicated region
        $region25: #{tpu_custom_call.1} parent=11 // pred_check
          %p220 = pneg %p128
        $region26: #{tpu_custom_call.1} parent=11 // pred_check_branch
          %222 = sbr.rel (%p220) target = $region28
        $region27: #{tpu_custom_call.1} parent=11 // pred_region
          %224 = vsyncadd [#allocation3], 0
          %s225 = sshll.u32 %s4, 4
          %s226 = int_to_ptr.hbm [resolvable:$true] %s225
          %s227 = sshll.u32 [#allocation2], 4
          %s228 = int_to_ptr.vmem [resolvable:$true] %s227
          %233 = dma.hbm_to_vmem [thread:$0]  %s226, 512, %s228, [#allocation3], 128, 128, 8
        $region28: #{tpu_custom_call.1} parent=11 // pred_fallthru
          _
        // Predicated region
        $region29: #{tpu_custom_call.1} parent=11 // pred_check
          %p234 = pneg %p149
        $region30: #{tpu_custom_call.1} parent=11 // pred_check_branch
          %236 = sbr.rel (%p234) target = $region32
        $region31: #{tpu_custom_call.1} parent=11 // pred_region
          %238 = vsyncadd [#allocation6], 0
          %s239 = sshll.u32 %s5, 4
          %s240 = int_to_ptr.hbm [resolvable:$true] %s239
          %s241 = sshll.u32 [#allocation5], 4
          %s242 = int_to_ptr.vmem [resolvable:$true] %s241
          %247 = dma.hbm_to_vmem [thread:$0]  %s240, 512, %s242, [#allocation6], 128, 128, 8
        $region32: #{tpu_custom_call.1} parent=11 // pred_fallthru
          _
        // Predicated region
        $region33: #{tpu_custom_call.1} parent=11 // pred_check
          %p248 = pneg %p170
        $region34: #{tpu_custom_call.1} parent=11 // pred_check_branch
          %250 = sbr.rel (%p248) target = $region36
        $region35: #{tpu_custom_call.1} parent=11 // pred_region
          _
        $region36: #{tpu_custom_call.1} parent=11 // pred_fallthru
          _
      $region12: #{tpu_custom_call.1} parent=5 // pred_fallthru
        _
      %p251 = scmp.lt.s32.totalorder %s18, 2
      // Predicated region
      $region37: #{tpu_custom_call.1} parent=5 // pred_check
        %p252 = pneg %p251
      $region38: #{tpu_custom_call.1} parent=5 // pred_check_branch
        %254 = sbr.rel (%p252) target = $region40
      $region39: #{tpu_custom_call.1} parent=5 // pred_region
        // Predicated region
        $region41: #{tpu_custom_call.1} parent=39 // pred_check
          %p255 = pneg %p38
        $region42: #{tpu_custom_call.1} parent=39 // pred_check_branch
          %257 = sbr.rel (%p255) target = $region44
        $region43: #{tpu_custom_call.1} parent=39 // pred_region
          %p258 = scmp.lt.s32.totalorder %s18, 1
          %s259 = scalar_select %p258, %s18, 1
          %s260 = smul.addr %s259, 2
          %s261 = smul.addr %s260, 8
          %s262 = scalar_lea.vmem %s0, %s261
        $region44: #{tpu_custom_call.1} parent=39 // pred_fallthru
          _
      $region40: #{tpu_custom_call.1} parent=5 // pred_fallthru
        _
      %p263 = scmp.le.s32.totalorder 1, %s18
      %p264 = scmp.lt.s32.totalorder %s18, 3
      %p265 = pnand %p263, %p264
      %p266 = pneg %p265
      // Predicated region
      $region45: #{tpu_custom_call.1} parent=5 // pred_check
        _
      $region46: #{tpu_custom_call.1} parent=5 // pred_check_branch
        %268 = sbr.rel (%p265) target = $region48
      $region47: #{tpu_custom_call.1} parent=5 // pred_region
        %s269 = ssub.s32 %s18, 1
        // Predicated region
        $region49: #{tpu_custom_call.1} parent=47 // pred_check
          %p270 = pneg %p128
        $region50: #{tpu_custom_call.1} parent=47 // pred_check_branch
          %272 = sbr.rel (%p270) target = $region52
        $region51: #{tpu_custom_call.1} parent=47 // pred_region
          %274 = dma.done [#allocation3], 512
        $region52: #{tpu_custom_call.1} parent=47 // pred_fallthru
          _
        // Predicated region
        $region53: #{tpu_custom_call.1} parent=47 // pred_check
          %p275 = pneg %p149
        $region54: #{tpu_custom_call.1} parent=47 // pred_check_branch
          %277 = sbr.rel (%p275) target = $region56
        $region55: #{tpu_custom_call.1} parent=47 // pred_region
          %279 = dma.done [#allocation6], 512
        $region56: #{tpu_custom_call.1} parent=47 // pred_fallthru
          _
        %p280 = scmp.lt.s32.totalorder %s23, 1
        %s281 = scalar_select %p280, %s23, 1
        %s282 = smul.addr %s281, 2
        %s283 = smul.addr %s282, 8
        %s284 = scalar_lea.vmem %s0, %s283
        %p285 = pneg %p44
        %p286 = pneg %p41
        %p287 = pneg %p65
        %p288 = pneg %p62
        %p289 = pneg %p86
        %p290 = pneg %p83
        %p291 = pneg %p107
        %p292 = pneg %p104
        %p293 = pneg %p128
        %p294 = pneg %p125
        %p295 = pneg %p149
        %p296 = pneg %p146
        %p297 = pneg %p170
        %p298 = pneg %p167
        %p299 = pneg %p196
        %p300 = pneg %p193
        %s301 = sand.u32 %s183, 1
        %s302 = scalar_lea.sflag [#allocation4], %s301
        %s303 = sand.u32 %s183, 1
        %s304 = smul.addr %s303, 8
        %s305 = scalar_lea.vmem [#allocation7], %s304
        %p306 = scmp.lt.s32.totalorder %s23, 1
        %s307 = scalar_select %p306, %s23, 1
        %s308 = smul.addr %s307, 2
        %s309 = smul.addr %s308, 8
        %s310 = scalar_lea.vmem %s0, %s309
        %v311 = vld [vmem:[%s310] sm:$0xff]
        %v312 = vld [vmem:[%s310 + $0x8] sm:$0x3]
        %v313 = vld [vmem:[%s1] sm:$0x1]
        %v314 = vld [vmem:[%s2] sm:$0x1]
        %vm315 = vcmask 261120
        %v316 = vsel %vm315, %v311, 0.0
        %317 = vadd.xlane.f32.xlu0 %v316
        %v318 = vpop.xlane.xlu0 %317
        %vm319 = vcmask 254976
        %v320 = vsel %vm319, %v312, 0.0
        %321 = vadd.xlane.f32.xlu0 %v320
        %v322 = vpop.xlane.xlu0 %321
        %v323 = vrcp.pop 32.0
        %v324 = vmul.f32 32.0, %v323
        %v325 = vsub.f32 1.0, %v324
        %v326 = vmul.f32 %v323, %v325
        %v327 = vadd.f32 %v323, %v326
        %vm328 = vweird.f32 %v323
        %v329 = vsel %vm328, %v323, %v327
        %v330 = vmul.f32 %v318, %v329
        %v331 = vmul.f32 %v322, %v329
        %v332 = vsub.f32 %v311, %v330
        %v333 = vsub.f32 %v312, %v331
        %v334 = vmul.f32 %v332, %v332
        %v335 = vmul.f32 %v333, %v333
        %v336 = vsel %vm315, %v334, 0.0
        %337 = vadd.xlane.f32.xlu0 %v336
        %v338 = vpop.xlane.xlu0 %337
        %v339 = vsel %vm319, %v335, 0.0
        %340 = vadd.xlane.f32.xlu0 %v339
        %v341 = vpop.xlane.xlu0 %340
        %v342 = vmul.f32 %v338, %v329
        %v343 = vmul.f32 %v341, %v329
        %v344 = vadd.f32 %v342, 1e-05
        %v345 = vadd.f32 %v343, 1e-05
        %v346 = vrsqrt.pop %v344
        %v347 = vmul.f32 %v346, %v344
        %v348 = vmul.f32 %v347, %v346
        %v349 = vmul.f32 0.5, %v348
        %v350 = vsub.f32 1.5, %v349
        %v351 = vmul.f32 %v346, %v350
        %vm352 = vweird.f32 %v344
        %vm353 = vweird.f32 %v346
        %vm354 = vmor %vm352, %vm353
        %v355 = vsel %vm354, %v346, %v351
        %v356 = vrsqrt.pop %v345
        %v357 = vmul.f32 %v356, %v345
        %v358 = vmul.f32 %v357, %v356
        %v359 = vmul.f32 0.5, %v358
        %v360 = vsub.f32 1.5, %v359
        %v361 = vmul.f32 %v356, %v360
        %vm362 = vweird.f32 %v345
        %vm363 = vweird.f32 %v356
        %vm364 = vmor %vm362, %vm363
        %v365 = vsel %vm364, %v356, %v361
        %v366 = vmul.f32 %v332, %v355
        %v367 = vmul.f32 %v333, %v365
        %v369 = vperm.slane %v313, 0
        %v371 = vmul.f32 %v366, %v369
        %v372 = vmul.f32 %v367, %v369
        %v374 = vperm.slane %v314, 0
        %v376 = vadd.f32 %v371, %v374
        %v377 = vadd.f32 %v372, %v374
        %v378 = vld [vmem:[#allocation2] sm:$0xff]
        %v379 = vld [vmem:[#allocation2 + $0x8] sm:$0xff]
        %v380 = vld [vmem:[#allocation2 + $0x10] sm:$0xff]
        %v381 = vld [vmem:[#allocation2 + $0x18] sm:$0xff]
        %v383 = vrot.slane %v377, 1
        %v384 = vsel %vm315, %v383, 0
        %386 = vmatpush.msra.mxu0 0.0
        %387 = vmatpush.msra.mxu0 0.0
        %388 = vmatpush.msra.mxu0 0.0
        %389 = vmatpush.msra.mxu0 0.0
        %390 = vmatpush.msra.mxu0 0.0
        %391 = vmatpush.msra.mxu0 0.0
        %392 = vmatpush.msra.mxu0 0.0
        %393 = vmatpush.msra.mxu0 0.0
        %394 = vmatpush.msra.mxu0 0.0
        %395 = vmatpush.msra.mxu0 0.0
        %396 = vmatpush.msra.mxu0 0.0
        %397 = vmatpush.msra.mxu0 0.0
        %398 = vmatpush.msra.mxu0 %v381
        %399 = vmatpush.msra.mxu0 %v380
        %400 = vmatpush.msra.mxu0 %v379
        %401 = vmatpush.msra.mxu0 %v378
        %402 = vmatmul.f32.gmra.mxu0 %v384
        %v403 = vpop.f32.mrf.mxu0
        %v404 = vadd.f32 0.0, %v403
        %405 = vdwg.mxu0
        %v406 = vld [vmem:[%s3] sm:$0xff]
        %v407 = vld [vmem:[%s3 + $0x8] sm:$0xff]
        %v408 = vld [vmem:[%s3 + $0x10] sm:$0xff]
        %v409 = vld [vmem:[%s3 + $0x18] sm:$0xff]
        %v410 = vld [vmem:[#allocation5] sm:$0xff]
        %v411 = vld [vmem:[#allocation5 + $0x8] sm:$0xff]
        %v412 = vld [vmem:[#allocation5 + $0x10] sm:$0xff]
        %v413 = vld [vmem:[#allocation5 + $0x18] sm:$0xff]
        %v414 = vld [vmem:[%s6] sm:$0x1]
        %v416 = vperm.slane %v414, 0
        %v418 = vadd.f32 %v311, %v416
        %v419 = vadd.f32 %v312, %v416
        %v421 = vsel %vm315, %v404, 0
        %423 = vmatpush.msra.mxu0 0.0
        %424 = vmatpush.msra.mxu0 0.0
        %425 = vmatpush.msra.mxu0 0.0
        %426 = vmatpush.msra.mxu0 0.0
        %427 = vmatpush.msra.mxu0 0.0
        %428 = vmatpush.msra.mxu0 0.0
        %429 = vmatpush.msra.mxu0 0.0
        %430 = vmatpush.msra.mxu0 0.0
        %431 = vmatpush.msra.mxu0 0.0
        %432 = vmatpush.msra.mxu0 0.0
        %433 = vmatpush.msra.mxu0 0.0
        %434 = vmatpush.msra.mxu0 0.0
        %435 = vmatpush.msra.mxu0 %v409
        %436 = vmatpush.msra.mxu0 %v408
        %437 = vmatpush.msra.mxu0 %v407
        %438 = vmatpush.msra.mxu0 %v406
        %439 = vmatmul.f32.gmra.mxu0 %v421
        %v440 = vpop.f32.mrf.mxu0
        %v441 = vadd.f32 0.0, %v440
        %442 = vdwg.mxu0
        %443 = vrot.lane.b32.xlu0 %v404, 96
        %v444 = vpop.permute.xlu0 %443
        %v445 = vsel %vm315, %v444, 0
        %447 = vmatpush.msra.mxu0 0.0
        %448 = vmatpush.msra.mxu0 0.0
        %449 = vmatpush.msra.mxu0 0.0
        %450 = vmatpush.msra.mxu0 0.0
        %451 = vmatpush.msra.mxu0 0.0
        %452 = vmatpush.msra.mxu0 0.0
        %453 = vmatpush.msra.mxu0 0.0
        %454 = vmatpush.msra.mxu0 0.0
        %455 = vmatpush.msra.mxu0 0.0
        %456 = vmatpush.msra.mxu0 0.0
        %457 = vmatpush.msra.mxu0 0.0
        %458 = vmatpush.msra.mxu0 0.0
        %459 = vmatpush.msra.mxu0 %v413
        %460 = vmatpush.msra.mxu0 %v412
        %461 = vmatpush.msra.mxu0 %v411
        %462 = vmatpush.msra.mxu0 %v410
        %463 = vmatmul.f32.gmra.mxu0 %v445
        %v464 = vpop.f32.mrf.mxu0
        %v465 = vadd.f32 0.0, %v464
        %466 = vdwg.mxu0
        %v467 = vperm.slane %v441, 0
        %v468 = vmul.f32 %v376, %v467
        %v469 = vmul.f32 %v377, %v467
        %vm470 = vcmask 261121
        %v471 = vsel %vm470, %v468, 0.0
        %472 = vadd.xlane.f32.xlu0 %v471
        %v473 = vpop.xlane.xlu0 %472
        %vm474 = vcmask 253952
        %v475 = vsel %vm474, %v469, 0.0
        %476 = vadd.xlane.f32.xlu0 %v475
        %v477 = vpop.xlane.xlu0 %476
        %v478 = vxor.u32 %v473, 2147483648
        %v479 = vxor.u32 %v477, 2147483648
        %v480 = vmul.f32 %v478, 1.442695
        %v481 = vpow.pop %v480
        %v482 = vmul.f32 %v479, 1.442695
        %v483 = vpow.pop %v482
        %v484 = vadd.f32 %v481, 1.0
        %v485 = vadd.f32 %v483, 1.0
        %v486 = vrcp.pop %v484
        %v487 = vmul.f32 %v484, %v486
        %v488 = vsub.f32 1.0, %v487
        %v489 = vmul.f32 %v486, %v488
        %v490 = vadd.f32 %v486, %v489
        %vm491 = vweird.f32 %v484
        %vm492 = vweird.f32 %v486
        %vm493 = vmor %vm491, %vm492
        %v494 = vsel %vm493, %v486, %v490
        %v495 = vand.u32 2147483647, %v484
        %vm496 = vcmp.eq.f32.partialorder %v495, 8.507059e+37
        %v497 = vand.u32 %v484, 2147483648
        %v498 = vor.u32 1.1754944e-38, %v497
        %v499 = vsel %vm496, %v498, %v494
        %v500 = vmul.f32 1.0, %v499
        %v501 = vrcp.pop %v485
        %v502 = vmul.f32 %v485, %v501
        %v503 = vsub.f32 1.0, %v502
        %v504 = vmul.f32 %v501, %v503
        %v505 = vadd.f32 %v501, %v504
        %vm506 = vweird.f32 %v485
        %vm507 = vweird.f32 %v501
        %vm508 = vmor %vm506, %vm507
        %v509 = vsel %vm508, %v501, %v505
        %v510 = vand.u32 2147483647, %v485
        %vm511 = vcmp.eq.f32.partialorder %v510, 8.507059e+37
        %v512 = vand.u32 %v485, 2147483648
        %v513 = vor.u32 1.1754944e-38, %v512
        %v514 = vsel %vm511, %v513, %v509
        %v515 = vmul.f32 1.0, %v514
        %v516 = vperm.slane %v465, 0
        %v517 = vmul.f32 %v500, %v516
        %v518 = vmul.f32 %v515, %v516
        %v519 = vadd.f32 %v418, %v517
        %v520 = vadd.f32 %v419, %v518
        %521 = vst.msk [vmem:[%s305 - $0x1] sm:$0xfe] %vm470, %v519
        %522 = vst.msk [vmem:[%s305 + $0x7] sm:$0x1] %vm474, %v520
        %s523 = sand.u32 %s183, 1
        %s524 = scalar_lea.sflag [#allocation4], %s523
        %s525 = sand.u32 %s183, 1
        %s526 = smul.addr %s525, 8
        %s527 = scalar_lea.vmem [#allocation7], %s526
        // Predicated region
        $region57: #{tpu_custom_call.1} parent=47 // pred_check
          %p528 = pneg %p193
        $region58: #{tpu_custom_call.1} parent=47 // pred_check_branch
          %530 = sbr.rel (%p528) target = $region60
        $region59: #{tpu_custom_call.1} parent=47 // pred_region
          %532 = vsyncadd %s524, 0
          %s533 = smul.addr %s23, 8
          %s534 = scalar_lea.hbm %s7, %s533
          %s536 = sshll.u32 %s527, 4
          %s537 = int_to_ptr.vmem [resolvable:$true] %s536
          %s538 = sshll.u32 %s534, 4
          %s539 = int_to_ptr.hbm [resolvable:$true] %s538
          %541 = dma.vmem_to_hbm [thread:$0]  %s537, 128, %s539, %s524
        $region60: #{tpu_custom_call.1} parent=47 // pred_fallthru
          _
      $region48: #{tpu_custom_call.1} parent=5 // pred_fallthru
        _
      %p542 = scmp.le.s32.totalorder 2, %s18
      // Predicated region
      $region61: #{tpu_custom_call.1} parent=5 // pred_check
        %p543 = pneg %p542
      $region62: #{tpu_custom_call.1} parent=5 // pred_check_branch
        %545 = sbr.rel (%p543) target = $region64
      $region63: #{tpu_custom_call.1} parent=5 // pred_region
        %s546 = ssub.s32 %s18, 2
        // Predicated region
        $region65: #{tpu_custom_call.1} parent=63 // pred_check
          %p547 = pneg %p199
        $region66: #{tpu_custom_call.1} parent=63 // pred_check_branch
          %549 = sbr.rel (%p547) target = $region68
        $region67: #{tpu_custom_call.1} parent=63 // pred_region
          %s550 = sand.u32 %s184, 1
          %s551 = scalar_lea.sflag [#allocation4], %s550
          %s552 = sand.u32 %s184, 1
          %s553 = smul.addr %s552, 8
          %s554 = scalar_lea.vmem [#allocation7], %s553
          %556 = dma.done %s551, 128
        $region68: #{tpu_custom_call.1} parent=63 // pred_fallthru
          _
      $region64: #{tpu_custom_call.1} parent=5 // pred_fallthru
        _
    $region6: #{tpu_custom_call.1} parent=1 // loop_footer
      %s22 = sadd.s32 1, %s18
    $region7: #{tpu_custom_call.1} parent=1 // loop_footer_branch
      %17 = sbr.rel target = $region3
    $region8: #{tpu_custom_call.1} parent=1 // loop_exit
      _
    %557 = vsyncpa [#allocation3], 1
    %s558 = scalar_lea.sflag [#allocation3], 1
    %559 = vsyncpa %s558, 1
    %560 = vsyncpa [#allocation6], 1
    %561 = vsyncpa [#allocation4], 1
    %s562 = scalar_lea.sflag [#allocation4], 1
    %563 = vsyncpa %s562, 1

</llo_original>
